<compile_context>
chip_gen: v7x
topology: tpu7x:2x2x1
jax: 0.10.0
libtpu: 0.0.40
codegen_flags: <defaults>
</compile_context>

<pallas_src>
import jax
import jax.numpy as jnp
from jax.experimental import pallas as pl
from jax.experimental.pallas import tpu as pltpu


_LANES = 1024          # lane-dense last dim (multiple of 128)
_MAX_TILE_ROWS = 1024  # rows per tile when the flattened view is large


def _round_up(x, m):
    return ((x + m - 1) // m) * m


def _blend_kernel(a_ref, h_ref, x0_ref, o_ref):
    # a_ref is the scalar-prefetch operand, living in SMEM with shape (1,).
    a = a_ref[0]
    h = h_ref[...].astype(jnp.float32)
    x0 = x0_ref[...].astype(jnp.float32)
    # x0 + a * (h - x0)  ==  a*h + (1-a)*x0
    o_ref[...] = (x0 + a * (h - x0)).astype(o_ref.dtype)


def blend_skip(a, h, x0):
    """out = a * h + (1 - a) * x0, as a tiled, pipelined Pallas TPU kernel."""
    assert h.shape == x0.shape and h.dtype == x0.dtype
    orig_shape, dtype = h.shape, h.dtype
    total = int(h.size)
    itemsize = jnp.dtype(dtype).itemsize

    # ---- lane-dense flattened layout: (rows, _LANES) ----
    cols = _LANES
    rows = _round_up(total, cols) // cols
    padded_total = rows * cols  # pad only up to the next full 1024-lane row

    if rows <= _MAX_TILE_ROWS:
        # One tile covers the whole (small) array: block == full array dims,
        # which satisfies the (8,128) block constraint regardless of `rows`.
        block_rows = rows
    else:
        # Large arrays: (1024, 1024) tiles; grid handles a partial last tile.
        block_rows = _MAX_TILE_ROWS

    def _flatten(x):
        xf = jnp.ravel(x)
        if padded_total != total:
            xf = jnp.pad(xf, (0, padded_total - total))
        return xf.reshape(rows, cols)

    h2 = _flatten(h)
    x02 = _flatten(x0)
    a_arr = jnp.asarray(a, dtype=jnp.float32).reshape(1)

    grid = (pl.cdiv(rows, block_rows),)
    data_spec = pl.BlockSpec((block_rows, cols), lambda i, a_ref: (i, 0))

    out_flat = pl.pallas_call(
        _blend_kernel,
        out_shape=jax.ShapeDtypeStruct((rows, cols), dtype),
        grid_spec=pltpu.PrefetchScalarGridSpec(
            num_scalar_prefetch=1,
            grid=grid,
            in_specs=[data_spec, data_spec],
            out_specs=data_spec,
        ),
        compiler_params=pltpu.CompilerParams(
            dimension_semantics=("parallel",),
            vmem_limit_bytes=32 << 20,
        ),
        cost_estimate=pl.CostEstimate(
            flops=3 * total,
            transcendentals=0,
            bytes_accessed=3 * total * itemsize,
        ),
    )(a_arr, h2, x02)

    return jnp.ravel(out_flat)[:total].reshape(orig_shape)


if __name__ == "__main__":
    key = jax.random.PRNGKey(0)
    kh, kx, kh2, kx2 = jax.random.split(key, 4)

    # Small NCHW activations: batch=2, channels=4, spatial=16x16.
    h = jax.random.normal(kh, (2, 4, 16, 16), dtype=jnp.float32)
    x0 = jax.random.normal(kx, (2, 4, 16, 16), dtype=jnp.float32)

    # Parameter init matches nn.Parameter(torch.tensor(0.0)).
    a = jnp.float32(0.0)
    out = jax.block_until_ready(blend_skip(a, h, x0))
    ref = a * h + (1.0 - a) * x0
    assert out.shape == h.shape and out.dtype == h.dtype
    assert jnp.allclose(out, ref, atol=1e-6), "mismatch vs reference (a=0.0)"

    # Nonzero blend factor.
    a2 = jnp.float32(0.3)
    out2 = jax.block_until_ready(blend_skip(a2, h, x0))
    ref2 = a2 * h + (1.0 - a2) * x0
    assert jnp.allclose(out2, ref2, atol=1e-6), "mismatch vs reference (a=0.3)"

    # Shape that exercises the pad-and-slice path (945 elements, not a
    # multiple of the 1024-lane flattened width).
    hb = jax.random.normal(kh2, (3, 5, 7, 9), dtype=jnp.float32)
    x0b = jax.random.normal(kx2, (3, 5, 7, 9), dtype=jnp.float32)
    out3 = jax.block_until_ready(blend_skip(a2, hb, x0b))
    ref3 = a2 * hb + (1.0 - a2) * x0b
    assert out3.shape == hb.shape
    assert jnp.allclose(out3, ref3, atol=1e-6), "mismatch vs reference (ragged)"

    print("KERNEL_OK")
</pallas_src>

<mosaic_0001>
module attributes {stable_mosaic.version = 11 : i64} {
  func.func @_blend_kernel(%arg0: i32, %arg1: memref<1xf32, #tpu.memory_space<smem>>, %arg2: memref<2x1024xf32, #tpu.memory_space<vmem>>, %arg3: memref<2x1024xf32, #tpu.memory_space<vmem>>, %arg4: memref<2x1024xf32, #tpu.memory_space<vmem>>) attributes {dimension_semantics = [#tpu.dimension_semantics<parallel>], iteration_bounds = array<i64: 1>, scalar_prefetch = 1 : i64, scratch_operands = 0 : i64, tpu.core_type = #tpu.core_type<tc>, window_params = [{transform_indices = @transform_0, window_bounds = array<i64: 2, 1024>}, {transform_indices = @transform_1, window_bounds = array<i64: 2, 1024>}, {transform_indices = @transform_2, window_bounds = array<i64: 2, 1024>}]} {
    %c0 = arith.constant 0 : index
    %0 = memref.load %arg1[%c0] : memref<1xf32, #tpu.memory_space<smem>>
    %c0_0 = arith.constant 0 : index
    %c0_1 = arith.constant 0 : index
    %1 = vector.load %arg2[%c0_0, %c0_1] : memref<2x1024xf32, #tpu.memory_space<vmem>>, vector<2x1024xf32>
    %c0_2 = arith.constant 0 : index
    %c0_3 = arith.constant 0 : index
    %2 = vector.load %arg3[%c0_2, %c0_3] : memref<2x1024xf32, #tpu.memory_space<vmem>>, vector<2x1024xf32>
    %3 = arith.subf %1, %2 : vector<2x1024xf32>
    %4 = vector.broadcast %0 : f32 to vector<2x1024xf32>
    %5 = arith.mulf %4, %3 : vector<2x1024xf32>
    %6 = arith.addf %2, %5 : vector<2x1024xf32>
    %c0_4 = arith.constant 0 : index
    %c0_5 = arith.constant 0 : index
    %7 = vector.load %arg4[%c0_4, %c0_5] : memref<2x1024xf32, #tpu.memory_space<vmem>>, vector<2x1024xf32>
    tpu.vector_store %arg4[%c0_4, %c0_5], %6 {strides = array<i32>} : memref<2x1024xf32, #tpu.memory_space<vmem>>, vector<2x1024xf32>,
    return
  }
  func.func @transform_0(%arg0: i32, %arg1: memref<1xf32, #tpu.memory_space<smem>>) -> (i32, i32) {
    %c0_i32 = arith.constant 0 : i32
    %c0_i32_0 = arith.constant 0 : i32
    return %arg0, %c0_i32 : i32, i32
  }
  func.func @transform_1(%arg0: i32, %arg1: memref<1xf32, #tpu.memory_space<smem>>) -> (i32, i32) {
    %c0_i32 = arith.constant 0 : i32
    %c0_i32_0 = arith.constant 0 : i32
    return %arg0, %c0_i32 : i32, i32
  }
  func.func @transform_2(%arg0: i32, %arg1: memref<1xf32, #tpu.memory_space<smem>>) -> (i32, i32) {
    %c0_i32 = arith.constant 0 : i32
    %c0_i32_0 = arith.constant 0 : i32
    return %arg0, %c0_i32 : i32, i32
  }
}

</mosaic_0001>

<llo_original>
// kernel: tpu_custom_call.1
$region0: #{tpu_custom_call.1}
  #allocation0 [shape = 'u32[]', space=smem, size = 0x4, offset = 0x4, fixed_abs, tag = 'smem constant byte address 0x4 - core index']
  #allocation1 [shape = 'u32[144,128]{1,0:T(1,128)}', space=vmem, size = 0x12000, scoped, tag = 'internal scratch']
  #allocation2 [shape = 's32[1]{0}', space=sflag, size = 0x4, scoped, tag = 'scoped memory for tpu_custom_call.1']
  #allocation3 [shape = 'f32[1]{0:T(128)S(6)}', space=smem, size = 0x200, scoped, tag = 'prefetched SMEM operand 0']
  %s0 = inlined_call_operand.<no memory space> [shape: f32[1], index: 0, kind: input, shape index: {}]
  %s1 = inlined_call_operand.hbm [shape: f32[2,1024], index: 1, kind: input, shape index: {}]
  %s2 = inlined_call_operand.hbm [shape: f32[2,1024], index: 2, kind: input, shape index: {}]
  %s3 = inlined_call_operand.hbm [shape: f32[2,1024], index: 3, kind: output, shape index: {}]
  %s4 = sld [smem:[#allocation0]]
  $region26: #{tpu_custom_call.1} parent=0
    _
  %s6 = ssub.s32 1, %s4
  %s7 = scalar_select 0, %s6, %s4
  %8 = sst [smem:[#allocation3]] %s0
  $region1: #{tpu_custom_call.1} parent=0
    #allocation4 [shape = 'u8[8192]{0}', space=vmem, size = 0x2000, scoped, tag = 'input window, operand 1, single buffered']
    #allocation5 [shape = 's32[1]{0}', space=sflag, size = 0x4, scoped, tag = 'scoped memory for tpu_custom_call.1']
    #allocation6 [shape = 's32[1]{0}', space=sflag, size = 0x4, scoped, tag = 'scoped memory for tpu_custom_call.1']
    #allocation7 [shape = 'u8[8192]{0}', space=vmem, size = 0x2000, scoped, tag = 'input window, operand 2, single buffered']
    #allocation8 [shape = 's32[1]{0}', space=sflag, size = 0x4, scoped, tag = 'scoped memory for tpu_custom_call.1']
    #allocation9 [shape = 'u8[8192]{0}', space=vmem, size = 0x2000, scoped, tag = 'output window, operand 0, single buffered']
    %9 = vsyncpa [#allocation5], 0
    %10 = vsyncpa [#allocation8], 0
    %11 = vsyncpa [#allocation6], 0
    // Predicated region
    $region2: #{tpu_custom_call.1} parent=1 // pred_check
      _
    $region3: #{tpu_custom_call.1} parent=1 // pred_check_branch
      %13 = sbr.rel (0) target = $region5
    $region4: #{tpu_custom_call.1} parent=1 // pred_region
      %s15 = ssub.s32 256, 256
      %16 = vsyncadd [#allocation5], %s15
      %s18 = sshll.u32 [#allocation4], 4
      %s19 = int_to_ptr.vmem [resolvable:$true] %s18
      %21 = dma.hbm_to_vmem [thread:$0]  %s1, 256, %s19, [#allocation5]
    $region5: #{tpu_custom_call.1} parent=1 // pred_fallthru
      _
    // Predicated region
    $region6: #{tpu_custom_call.1} parent=1 // pred_check
      _
    $region7: #{tpu_custom_call.1} parent=1 // pred_check_branch
      %23 = sbr.rel (0) target = $region9
    $region8: #{tpu_custom_call.1} parent=1 // pred_region
      %s25 = ssub.s32 256, 256
      %26 = vsyncadd [#allocation8], %s25
      %s28 = sshll.u32 [#allocation7], 4
      %s29 = int_to_ptr.vmem [resolvable:$true] %s28
      %31 = dma.hbm_to_vmem [thread:$0]  %s2, 256, %s29, [#allocation8]
    $region9: #{tpu_custom_call.1} parent=1 // pred_fallthru
      _
    // Predicated region
    $region10: #{tpu_custom_call.1} parent=1 // pred_check
      _
    $region11: #{tpu_custom_call.1} parent=1 // pred_check_branch
      %33 = sbr.rel (0) target = $region13
    $region12: #{tpu_custom_call.1} parent=1 // pred_region
      %34 = dma.done [#allocation5], 256
    $region13: #{tpu_custom_call.1} parent=1 // pred_fallthru
      _
    // Predicated region
    $region14: #{tpu_custom_call.1} parent=1 // pred_check
      _
    $region15: #{tpu_custom_call.1} parent=1 // pred_check_branch
      %36 = sbr.rel (0) target = $region17
    $region16: #{tpu_custom_call.1} parent=1 // pred_region
      %37 = dma.done [#allocation8], 256
    $region17: #{tpu_custom_call.1} parent=1 // pred_fallthru
      _
    %s38 = sld [smem:[#allocation3]]
    %v39 = vld [vmem:[#allocation4] sm:$0xff]
    %v40 = vld [vmem:[#allocation4 + $0x8] sm:$0xff]
    %v41 = vld [vmem:[#allocation7] sm:$0xff]
    %v42 = vld [vmem:[#allocation7 + $0x8] sm:$0xff]
    %v43 = vsub.f32 %v39, %v41
    %v44 = vsub.f32 %v40, %v42
    %v45 = vstv %s38
    %v46 = vmul.f32 %v45, %v43
    %v47 = vmul.f32 %v45, %v44
    %v48 = vadd.f32 %v41, %v46
    %v49 = vadd.f32 %v42, %v47
    %50 = vst [vmem:[#allocation9] sm:$0xff] %v48
    %51 = vst [vmem:[#allocation9 + $0x8] sm:$0xff] %v49
    // Predicated region
    $region18: #{tpu_custom_call.1} parent=1 // pred_check
      _
    $region19: #{tpu_custom_call.1} parent=1 // pred_check_branch
      %53 = sbr.rel (0) target = $region21
    $region20: #{tpu_custom_call.1} parent=1 // pred_region
      %s55 = ssub.s32 256, 256
      %56 = vsyncadd [#allocation6], %s55
      %s58 = sshll.u32 [#allocation9], 4
      %s59 = int_to_ptr.vmem [resolvable:$true] %s58
      %61 = dma.vmem_to_hbm [thread:$0]  %s59, 256, %s3, [#allocation6]
    $region21: #{tpu_custom_call.1} parent=1 // pred_fallthru
      _
    // Predicated region
    $region22: #{tpu_custom_call.1} parent=1 // pred_check
      _
    $region23: #{tpu_custom_call.1} parent=1 // pred_check_branch
      %63 = sbr.rel (0) target = $region25
    $region24: #{tpu_custom_call.1} parent=1 // pred_region
      %64 = dma.done [#allocation6], 256
    $region25: #{tpu_custom_call.1} parent=1 // pred_fallthru
      _
    %65 = vsyncpa [#allocation5], 1
    %66 = vsyncpa [#allocation8], 1
    %67 = vsyncpa [#allocation6], 1

</llo_original>
